<compile_context>
chip_gen: v7x
topology: tpu7x:2x2x1
jax: 0.10.0
libtpu: 0.0.40
codegen_flags: <defaults>
</compile_context>

<pallas_src>
import functools

import jax
import jax.numpy as jnp
from jax.experimental import pallas as pl
from jax.experimental.pallas import tpu as pltpu


_LANES = 1024  # lane-dense trailing axis (8 vregs / row), multiple of 128


def _round_up(a, b):
    return ((a + b - 1) // b) * b


# --------------------------------------------------------------------------
# k-vector grid generation (glue, plain JAX) -- mirrors
# torchpme.lib.generate_kvectors_for_mesh for an rfftn-shaped mesh.
# --------------------------------------------------------------------------
def generate_kvectors_for_mesh(ns, cell):
    nx, ny, nz = int(ns[0]), int(ns[1]), int(ns[2])
    # reciprocal basis: rows b_i with  cell @ B.T = 2*pi*I
    B = 2.0 * jnp.pi * jnp.linalg.inv(cell).T
    fx = (jnp.fft.fftfreq(nx) * nx).astype(jnp.float32)
    fy = (jnp.fft.fftfreq(ny) * ny).astype(jnp.float32)
    fz = (jnp.fft.rfftfreq(nz) * nz).astype(jnp.float32)
    kx = fx[:, None, None, None] * B[0][None, None, None, :]
    ky = fy[None, :, None, None] * B[1][None, None, None, :]
    kz = fz[None, None, :, None] * B[2][None, None, None, :]
    return (kx + ky + kz).astype(jnp.float32)  # (nx, ny, nz//2+1, 3)


# --------------------------------------------------------------------------
# Pallas kernel: multiply the (real, imag) spectrum planes by the precomputed
# filter.  Pure VPU multiply -> strictly HBM-bound; phi broadcast is free.
#   re_ref/im_ref/ore_ref/oim_ref: (tC, tS, L)   phi_ref: (tS, L)
# --------------------------------------------------------------------------
def _apply_filter_kernel(re_ref, im_ref, phi_ref, ore_ref, oim_ref):
    phi = phi_ref[...][None, :, :]
    ore_ref[...] = re_ref[...] * phi
    oim_ref[...] = im_ref[...] * phi


# --------------------------------------------------------------------------
# Generation-aware VMEM budgeting and tile selection.
# --------------------------------------------------------------------------
def _vmem_budget_bytes():
    cap = None
    try:
        info = pltpu.get_tpu_info()
        cap = getattr(info, "vmem_capacity_bytes", None)
    except Exception:
        cap = None
    if cap is None:
        cap = 64 * 1024 * 1024  # conservative: assume a 64-MiB-VMEM part (v7x)
    if cap < 100 * 1024 * 1024:
        # v7x-class: 64 MiB per TensorCore, and the 'parallel' grid axes may put
        # a working set on each of the two TCs -> modest block budget.
        return 24 * 1024 * 1024, 48 * 1024 * 1024
    # v5e / v6e: 128 MiB physical VMEM -> larger blocks get closer to roofline.
    return 32 * 1024 * 1024, 64 * 1024 * 1024


def _choose_tiles(C, S, budget):
    """Pick (tC, tS): channel tile and sublane-row tile for (C, S, L) planes."""
    L = _LANES

    def step_bytes(tc, ts):
        # double-buffered: (re+im inputs + re+im outputs) * tc rows + 1 phi row
        return 2 * (4 * tc + 1) * ts * L * 4

    tC = min(C, 16)
    while tC > 1 and step_bytes(tC, 8) > budget:
        tC = max(1, tC // 2)

    tS_max = (budget // (2 * (4 * tC + 1) * L * 4)) // 8 * 8
    tS_max = int(max(8, min(tS_max, 2048)))

    # Near-even tiles (no huge ragged tail), and >= 4 S-steps when the spectrum
    # is big enough so the parallel axis shards across TCs and DMAs overlap.
    min_steps = 4 if S >= 32 else 1
    n_steps = max(pl.cdiv(S, tS_max), min_steps)
    tS = min(tS_max, _round_up(pl.cdiv(S, n_steps), 8))
    tS = max(8, min(tS, S))  # S is a multiple of 8 by construction
    return tC, tS


# --------------------------------------------------------------------------
# Pallas filter application on a complex spectrum.
#   mesh_hat : (C, nx, ny, nzh) complex64
#   phi_lanes: (S, L) float32, pre-padded lane-dense filter (from update()).
# --------------------------------------------------------------------------
def _pallas_apply_filter(mesh_hat, phi_lanes):
    C = mesh_hat.shape[0]
    N = mesh_hat.shape[1] * mesh_hat.shape[2] * mesh_hat.shape[3]
    S, L = phi_lanes.shape
    Npad = S * L

    budget, vmem_limit = _vmem_budget_bytes()
    tC, tS = _choose_tiles(C, S, budget)

    def to_lanes(x):
        x = x.reshape(C, N)
        if Npad != N:
            x = jnp.pad(x, ((0, 0), (0, Npad - N)))
        return x.reshape(C, S, L)

    # real/imag split + (tiny) pad + reshape are allowed to fuse into the
    # pallas_call operands (allow_input_fusion) -> no extra materialized pass.
    re3 = to_lanes(jnp.real(mesh_hat).astype(jnp.float32))
    im3 = to_lanes(jnp.imag(mesh_hat).astype(jnp.float32))

    grid = (pl.cdiv(S, tS), pl.cdiv(C, tC))  # channel axis innermost: phi stays resident
    spec_bs = pl.BlockSpec((tC, tS, L), lambda s, c: (c, s, 0))
    phi_bs = pl.BlockSpec((tS, L), lambda s, c: (s, 0))

    out_re, out_im = pl.pallas_call(
        _apply_filter_kernel,
        out_shape=(
            jax.ShapeDtypeStruct((C, S, L), jnp.float32),
            jax.ShapeDtypeStruct((C, S, L), jnp.float32),
        ),
        grid=grid,
        in_specs=[spec_bs, spec_bs, phi_bs],
        out_specs=(spec_bs, spec_bs),
        # Overwrite the spectrum planes in place (saves HBM allocations).
        input_output_aliases={0: 0, 1: 1},
        compiler_params=pltpu.CompilerParams(
            dimension_semantics=("parallel", "parallel"),
            vmem_limit_bytes=vmem_limit,
            allow_input_fusion=[True, True, False],
        ),
        cost_estimate=pl.CostEstimate(
            flops=2 * C * Npad,
            transcendentals=0,
            bytes_accessed=(4 * C + 1) * Npad * 4,
        ),
    )(re3, im3, phi_lanes)

    def from_lanes(x):
        x = x.reshape(C, Npad)
        if Npad != N:
            x = x[:, :N]
        return x.reshape(mesh_hat.shape)

    return jax.lax.complex(from_lanes(out_re), from_lanes(out_im))


# --------------------------------------------------------------------------
# jitted forward: rfftn -> (filter) -> irfftn
# --------------------------------------------------------------------------
@functools.partial(jax.jit, static_argnames=("fft_norm", "ifft_norm", "use_pallas"))
def _kspace_filter_forward(mesh_values, kfilter, *, fft_norm, ifft_norm, use_pallas):
    C, nx, ny, nz = mesh_values.shape
    dims = (1, 2, 3)
    # TODO(synk): rfftn/irfftn have no Pallas primitive on TPU; kept as XLA FFT.
    mesh_hat = jnp.fft.rfftn(mesh_values.astype(jnp.float32), axes=dims, norm=fft_norm)
    if use_pallas:
        # kfilter here is the pre-padded lane-dense (S, 1024) buffer.
        filter_hat = _pallas_apply_filter(mesh_hat, kfilter)
    else:
        # Traffic-optimal XLA-fused multiply (kfilter has the natural k-grid shape).
        filter_hat = mesh_hat * kfilter
    return jnp.fft.irfftn(filter_hat, axes=dims, norm=ifft_norm, s=(nx, ny, nz))


# --------------------------------------------------------------------------
# KSpaceKernel / KSpaceFilter equivalents
# --------------------------------------------------------------------------
class KSpaceKernel:
    def kernel_from_k_sq(self, k_sq):
        raise NotImplementedError(
            f"kernel_from_k_sq is not implemented for '{self.__class__.__name__}'"
        )


class GaussianKSpaceKernel(KSpaceKernel):
    """phi(k^2) = exp(-0.5 * smearing^2 * k^2) (Ewald-style Gaussian filter)."""

    def __init__(self, smearing: float = 1.0):
        self.smearing = float(smearing)

    def kernel_from_k_sq(self, k_sq):
        return jnp.exp(-0.5 * self.smearing * self.smearing * k_sq)


class KSpaceFilter:
    # Below this many spectrum elements (C * nx * ny * nzh), the real/imag split
    # + complex recombine around the Pallas kernel costs more HBM traffic than
    # the XLA-fused multiply -> "auto" takes the fused path (reviewer item #1).
    _AUTO_PALLAS_MIN_ELEMS = 1 << 22

    def __init__(self, cell, ns_mesh, kernel, fft_norm="ortho", ifft_norm="ortho",
                 use_pallas="auto"):
        if fft_norm not in ("ortho", "forward", "backward"):
            raise ValueError(f"Invalid option '{fft_norm}' for the `fft_norm` parameter.")
        if ifft_norm not in ("ortho", "forward", "backward"):
            raise ValueError(f"Invalid option '{ifft_norm}' for the `ifft_norm` parameter.")
        if use_pallas not in (True, False, "auto"):
            raise ValueError("`use_pallas` must be True, False or 'auto'.")
        self._fft_norm = fft_norm
        self._ifft_norm = ifft_norm
        self._use_pallas = use_pallas
        self.kernel = kernel
        self.update(cell, ns_mesh)

    def _prep_kvectors(self, cell, ns_mesh):
        if cell is not None:
            cell = jnp.asarray(cell, jnp.float32)
            if cell.shape != (3, 3):
                raise ValueError(f"cell of shape {list(cell.shape)} should be of shape (3, 3)")
            self.cell = cell
        if ns_mesh is not None:
            ns_mesh = jnp.asarray(ns_mesh, jnp.int32)
            if ns_mesh.shape != (3,):
                raise ValueError(f"shape {list(ns_mesh.shape)} of `ns_mesh` has to be (3,)")
            self.ns_mesh = ns_mesh
        if cell is not None or ns_mesh is not None:
            self._kvectors = generate_kvectors_for_mesh(self.ns_mesh, self.cell)
            self._k_sq = jnp.sum(self._kvectors * self._kvectors, axis=3)

    def update(self, cell=None, ns_mesh=None):
        self._prep_kvectors(cell, ns_mesh)
        # Hoisted transcendental: phi(|k|^2) is evaluated once here, not per call.
        kf = jnp.asarray(self.kernel.kernel_from_k_sq(self._k_sq), jnp.float32)
        self._kfilter = kf  # (nx, ny, nz//2+1), used by the XLA path + shape checks
        # Pre-lay-out phi in the lane-dense (S, 1024) shape used by the Pallas
        # kernel (padding bounded to < 8*1024 elements).
        N = int(kf.size)
        Npad = _round_up(N, 8 * _LANES)
        flat = kf.reshape(-1)
        if Npad != N:
            flat = jnp.pad(flat, (0, Npad - N))
        self._kfilter_lanes = flat.reshape(Npad // _LANES, _LANES)

    def forward(self, mesh_values):
        mesh_values = jnp.asarray(mesh_values)
        if mesh_values.ndim != 4:
            raise ValueError(
                f"`mesh_values` needs to be a 4 dimensional tensor, got {mesh_values.ndim}"
            )
        nx, ny, nz = mesh_values.shape[1:]
        if (nx, ny, nz // 2 + 1) != tuple(self._kfilter.shape):
            raise ValueError("The real-space mesh is inconsistent with the k-space grid.")

        use_pallas = self._use_pallas
        if use_pallas == "auto":
            n_spec = int(self._kfilter.size) * int(mesh_values.shape[0])
            use_pallas = n_spec >= self._AUTO_PALLAS_MIN_ELEMS
        use_pallas = bool(use_pallas)

        kfilter_arg = self._kfilter_lanes if use_pallas else self._kfilter
        # TODO(synk): the PyTorch module's device-synchronizing NaN check is omitted
        # from the jitted hot path; the self-test below asserts no NaNs instead.
        result = _kspace_filter_forward(
            mesh_values,
            kfilter_arg,
            fft_norm=self._fft_norm,
            ifft_norm=self._ifft_norm,
            use_pallas=use_pallas,
        )
        return result.astype(mesh_values.dtype)

    __call__ = forward


# --------------------------------------------------------------------------
# Pure-JAX reference (mirrors the PyTorch forward semantics exactly)
# --------------------------------------------------------------------------
def _reference_forward(mesh_values, k_sq, smearing, fft_norm, ifft_norm):
    dims = (1, 2, 3)
    mesh_hat = jnp.fft.rfftn(mesh_values, axes=dims, norm=fft_norm)
    phi = jnp.exp(-0.5 * smearing * smearing * k_sq)
    filter_hat = mesh_hat * phi
    return jnp.fft.irfftn(
        filter_hat, axes=dims, norm=ifft_norm, s=mesh_values.shape[-3:]
    )


if __name__ == "__main__":
    key = jax.random.PRNGKey(0)
    k1, k2 = jax.random.split(key)

    def run_case(rng, C, ns, use_pallas):
        nx, ny, nz = ns
        cell = jnp.diag(jnp.array([2.0, 3.0, 4.0], dtype=jnp.float32))
        ns_mesh = jnp.array([nx, ny, nz], dtype=jnp.int32)
        mesh_values = jax.random.normal(rng, (C, nx, ny, nz), dtype=jnp.float32)

        kernel = GaussianKSpaceKernel(smearing=1.0)
        ksf = KSpaceFilter(cell, ns_mesh, kernel, fft_norm="ortho", ifft_norm="ortho",
                           use_pallas=use_pallas)
        out = jax.block_until_ready(ksf(mesh_values))
        ref = jax.block_until_ready(
            _reference_forward(mesh_values, ksf._k_sq, kernel.smearing, "ortho", "ortho")
        )
        assert out.shape == mesh_values.shape
        assert not bool(jnp.isnan(out).any())
        assert bool(jnp.allclose(out, ref, atol=1e-5, rtol=1e-5))

    # Pallas path forced on two small meshes: one tile-aligned, one exercising
    # the bounded padding + ragged last block + multi-step grid.
    run_case(k1, 2, (16, 16, 16), True)
    run_case(k2, 2, (40, 40, 42), True)
    # "auto" at this small size takes the XLA-fused path; results agree too.
    run_case(k1, 2, (16, 16, 16), "auto")

    print("KERNEL_OK")
</pallas_src>

<mosaic_0001>
module attributes {stable_mosaic.version = 11 : i64} {
  func.func @_apply_filter_kernel(%arg0: i32, %arg1: i32, %arg2: memref<2x8x1024xf32, #tpu.memory_space<vmem>>, %arg3: memref<2x8x1024xf32, #tpu.memory_space<vmem>>, %arg4: memref<8x1024xf32, #tpu.memory_space<vmem>>, %arg5: memref<2x8x1024xf32, #tpu.memory_space<vmem>>, %arg6: memref<2x8x1024xf32, #tpu.memory_space<vmem>>) attributes {dimension_semantics = [#tpu.dimension_semantics<parallel>, #tpu.dimension_semantics<parallel>], iteration_bounds = array<i64: 1, 1>, scalar_prefetch = 0 : i64, scratch_operands = 0 : i64, tpu.core_type = #tpu.core_type<tc>, window_params = [{transform_indices = @transform_0, window_bounds = array<i64: 2, 8, 1024>}, {transform_indices = @transform_1, window_bounds = array<i64: 2, 8, 1024>}, {transform_indices = @transform_2, window_bounds = array<i64: 8, 1024>}, {transform_indices = @transform_3, window_bounds = array<i64: 2, 8, 1024>}, {transform_indices = @transform_4, window_bounds = array<i64: 2, 8, 1024>}]} {
    %c0 = arith.constant 0 : index
    %c0_0 = arith.constant 0 : index
    %0 = vector.load %arg4[%c0, %c0_0] : memref<8x1024xf32, #tpu.memory_space<vmem>>, vector<8x1024xf32>
    %1 = vector.shape_cast %0 : vector<8x1024xf32> to vector<1x8x1024xf32>
    %c0_1 = arith.constant 0 : index
    %c0_2 = arith.constant 0 : index
    %c0_3 = arith.constant 0 : index
    %2 = vector.load %arg2[%c0_1, %c0_2, %c0_3] : memref<2x8x1024xf32, #tpu.memory_space<vmem>>, vector<2x8x1024xf32>
    %3 = vector.broadcast %1 : vector<1x8x1024xf32> to vector<2x8x1024xf32>
    %4 = arith.mulf %2, %3 : vector<2x8x1024xf32>
    %c0_4 = arith.constant 0 : index
    %c0_5 = arith.constant 0 : index
    %c0_6 = arith.constant 0 : index
    %5 = vector.load %arg5[%c0_4, %c0_5, %c0_6] : memref<2x8x1024xf32, #tpu.memory_space<vmem>>, vector<2x8x1024xf32>
    tpu.vector_store %arg5[%c0_4, %c0_5, %c0_6], %4 {strides = array<i32>} : memref<2x8x1024xf32, #tpu.memory_space<vmem>>, vector<2x8x1024xf32>,
    %c0_7 = arith.constant 0 : index
    %c0_8 = arith.constant 0 : index
    %c0_9 = arith.constant 0 : index
    %6 = vector.load %arg3[%c0_7, %c0_8, %c0_9] : memref<2x8x1024xf32, #tpu.memory_space<vmem>>, vector<2x8x1024xf32>
    %7 = vector.broadcast %1 : vector<1x8x1024xf32> to vector<2x8x1024xf32>
    %8 = arith.mulf %6, %7 : vector<2x8x1024xf32>
    %c0_10 = arith.constant 0 : index
    %c0_11 = arith.constant 0 : index
    %c0_12 = arith.constant 0 : index
    %9 = vector.load %arg6[%c0_10, %c0_11, %c0_12] : memref<2x8x1024xf32, #tpu.memory_space<vmem>>, vector<2x8x1024xf32>
    tpu.vector_store %arg6[%c0_10, %c0_11, %c0_12], %8 {strides = array<i32>} : memref<2x8x1024xf32, #tpu.memory_space<vmem>>, vector<2x8x1024xf32>,
    return
  }
  func.func @transform_0(%arg0: i32, %arg1: i32) -> (i32, i32, i32) {
    %c0_i32 = arith.constant 0 : i32
    %c0_i32_0 = arith.constant 0 : i32
    return %arg1, %arg0, %c0_i32 : i32, i32, i32
  }
  func.func @transform_1(%arg0: i32, %arg1: i32) -> (i32, i32, i32) {
    %c0_i32 = arith.constant 0 : i32
    %c0_i32_0 = arith.constant 0 : i32
    return %arg1, %arg0, %c0_i32 : i32, i32, i32
  }
  func.func @transform_2(%arg0: i32, %arg1: i32) -> (i32, i32) {
    %c0_i32 = arith.constant 0 : i32
    %c0_i32_0 = arith.constant 0 : i32
    return %arg0, %c0_i32 : i32, i32
  }
  func.func @transform_3(%arg0: i32, %arg1: i32) -> (i32, i32, i32) {
    %c0_i32 = arith.constant 0 : i32
    %c0_i32_0 = arith.constant 0 : i32
    return %arg1, %arg0, %c0_i32 : i32, i32, i32
  }
  func.func @transform_4(%arg0: i32, %arg1: i32) -> (i32, i32, i32) {
    %c0_i32 = arith.constant 0 : i32
    %c0_i32_0 = arith.constant 0 : i32
    return %arg1, %arg0, %c0_i32 : i32, i32, i32
  }
}

</mosaic_0001>

<llo_original>
// kernel: _kspace_filter_forward.2
$region0: #{_kspace_filter_forward.2}
  #allocation0 [shape = 'u32[]', space=smem, size = 0x4, offset = 0x4, fixed_abs, tag = 'smem constant byte address 0x4 - core index']
  #allocation1 [shape = 'u32[144,128]{1,0:T(1,128)}', space=vmem, size = 0x12000, scoped, tag = 'internal scratch']
  %s0 = inlined_call_operand.vmem [shape: f32[8,1024], index: 0, kind: input, shape index: {}]
  %s1 = inlined_call_operand.vmem [shape: f32[1,2,8,1024], index: 1, kind: input, shape index: {}]
  %s2 = inlined_call_operand.vmem [shape: f32[1,2,8,1024], index: 2, kind: input, shape index: {}]
  %s3 = inlined_call_operand.vmem [shape: f32[2,8,1024], index: 3, kind: output, shape index: {0}]
  %s4 = inlined_call_operand.vmem [shape: f32[2,8,1024], index: 4, kind: output, shape index: {1}]
  %5 = xla_tuple %s3, %s4
  %s6 = sld [smem:[#allocation0]]
  $region30: #{_kspace_filter_forward.2} parent=0
    _
  %s8 = ssub.s32 1, %s6
  %s9 = scalar_select 0, %s8, %s6
  $region1: #{_kspace_filter_forward.2} parent=0
    #allocation2 [shape = 'u8[65536]{0}', space=vmem, size = 0x10000, dematerialized = true, scoped, tag = 'FusionAdapter Buffer %fusion.31 = f32[2,8,1024]{2,1,0:T(8,128)} fusion(%param_2.71), kind=kLoop, calls=%fused_computation.55.clone, metadata={op_name="jit(_kspace_filter_forward)/reshape" stack_frame_id=27}']
    #allocation3 [shape = 'u8[65536]{0}', space=vmem, size = 0x10000, dematerialized = true, scoped, tag = 'FusionAdapter Buffer %fusion.30 = f32[2,8,1024]{2,1,0:T(8,128)} fusion(%param_1.120), kind=kLoop, calls=%fused_computation.54.clone, metadata={op_name="jit(_kspace_filter_forward)/reshape" stack_frame_id=33}']
    // Predicated region
    $region2: #{_kspace_filter_forward.2} parent=1 // pred_check
      _
    $region3: #{_kspace_filter_forward.2} parent=1 // pred_check_branch
      %11 = sbr.rel (0) target = $region5
    $region4: #{_kspace_filter_forward.2} parent=1 // pred_region
      _
    $region5: #{_kspace_filter_forward.2} parent=1 // pred_fallthru
      _
    // Predicated region
    $region6: #{_kspace_filter_forward.2} parent=1 // pred_check
      _
    $region7: #{_kspace_filter_forward.2} parent=1 // pred_check_branch
      %13 = sbr.rel (0) target = $region9
    $region8: #{_kspace_filter_forward.2} parent=1 // pred_region
      _
    $region9: #{_kspace_filter_forward.2} parent=1 // pred_fallthru
      _
    // Predicated region
    $region10: #{_kspace_filter_forward.2} parent=1 // pred_check
      _
    $region11: #{_kspace_filter_forward.2} parent=1 // pred_check_branch
      %15 = sbr.rel (0) target = $region13
    $region12: #{_kspace_filter_forward.2} parent=1 // pred_region
      _
    $region13: #{_kspace_filter_forward.2} parent=1 // pred_fallthru
      _
    %v16 = vld [vmem:[%s2] sm:$0xff]
    %18 = vst [vmem:[#allocation2] sm:$0xff] %v16
    %s19 = scalar_lea.vmem %s2, 8
    %v20 = vld [vmem:[%s19] sm:$0xff]
    %s21 = scalar_lea.vmem [#allocation2], 8
    %23 = vst [vmem:[%s21] sm:$0xff] %v20
    %s24 = scalar_lea.vmem %s2, 16
    %v25 = vld [vmem:[%s24] sm:$0xff]
    %s26 = scalar_lea.vmem [#allocation2], 16
    %28 = vst [vmem:[%s26] sm:$0xff] %v25
    %s29 = scalar_lea.vmem %s2, 24
    %v30 = vld [vmem:[%s29] sm:$0xff]
    %s31 = scalar_lea.vmem [#allocation2], 24
    %33 = vst [vmem:[%s31] sm:$0xff] %v30
    %s34 = scalar_lea.vmem %s2, 32
    %v35 = vld [vmem:[%s34] sm:$0xff]
    %s36 = scalar_lea.vmem [#allocation2], 32
    %38 = vst [vmem:[%s36] sm:$0xff] %v35
    %s39 = scalar_lea.vmem %s2, 40
    %v40 = vld [vmem:[%s39] sm:$0xff]
    %s41 = scalar_lea.vmem [#allocation2], 40
    %43 = vst [vmem:[%s41] sm:$0xff] %v40
    %s44 = scalar_lea.vmem %s2, 48
    %v45 = vld [vmem:[%s44] sm:$0xff]
    %s46 = scalar_lea.vmem [#allocation2], 48
    %48 = vst [vmem:[%s46] sm:$0xff] %v45
    %s49 = scalar_lea.vmem %s2, 56
    %v50 = vld [vmem:[%s49] sm:$0xff]
    %s51 = scalar_lea.vmem [#allocation2], 56
    %53 = vst [vmem:[%s51] sm:$0xff] %v50
    %s54 = scalar_lea.vmem %s2, 64
    %v55 = vld [vmem:[%s54] sm:$0xff]
    %s56 = scalar_lea.vmem [#allocation2], 64
    %58 = vst [vmem:[%s56] sm:$0xff] %v55
    %s59 = scalar_lea.vmem %s2, 72
    %v60 = vld [vmem:[%s59] sm:$0xff]
    %s61 = scalar_lea.vmem [#allocation2], 72
    %63 = vst [vmem:[%s61] sm:$0xff] %v60
    %s64 = scalar_lea.vmem %s2, 80
    %v65 = vld [vmem:[%s64] sm:$0xff]
    %s66 = scalar_lea.vmem [#allocation2], 80
    %68 = vst [vmem:[%s66] sm:$0xff] %v65
    %s69 = scalar_lea.vmem %s2, 88
    %v70 = vld [vmem:[%s69] sm:$0xff]
    %s71 = scalar_lea.vmem [#allocation2], 88
    %73 = vst [vmem:[%s71] sm:$0xff] %v70
    %s74 = scalar_lea.vmem %s2, 96
    %v75 = vld [vmem:[%s74] sm:$0xff]
    %s76 = scalar_lea.vmem [#allocation2], 96
    %78 = vst [vmem:[%s76] sm:$0xff] %v75
    %s79 = scalar_lea.vmem %s2, 104
    %v80 = vld [vmem:[%s79] sm:$0xff]
    %s81 = scalar_lea.vmem [#allocation2], 104
    %83 = vst [vmem:[%s81] sm:$0xff] %v80
    %s84 = scalar_lea.vmem %s2, 112
    %v85 = vld [vmem:[%s84] sm:$0xff]
    %s86 = scalar_lea.vmem [#allocation2], 112
    %88 = vst [vmem:[%s86] sm:$0xff] %v85
    %s89 = scalar_lea.vmem %s2, 120
    %v90 = vld [vmem:[%s89] sm:$0xff]
    %s91 = scalar_lea.vmem [#allocation2], 120
    %93 = vst [vmem:[%s91] sm:$0xff] %v90
    %v94 = vld [vmem:[%s1] sm:$0xff]
    %96 = vst [vmem:[#allocation3] sm:$0xff] %v94
    %s97 = scalar_lea.vmem %s1, 8
    %v98 = vld [vmem:[%s97] sm:$0xff]
    %s99 = scalar_lea.vmem [#allocation3], 8
    %101 = vst [vmem:[%s99] sm:$0xff] %v98
    %s102 = scalar_lea.vmem %s1, 16
    %v103 = vld [vmem:[%s102] sm:$0xff]
    %s104 = scalar_lea.vmem [#allocation3], 16
    %106 = vst [vmem:[%s104] sm:$0xff] %v103
    %s107 = scalar_lea.vmem %s1, 24
    %v108 = vld [vmem:[%s107] sm:$0xff]
    %s109 = scalar_lea.vmem [#allocation3], 24
    %111 = vst [vmem:[%s109] sm:$0xff] %v108
    %s112 = scalar_lea.vmem %s1, 32
    %v113 = vld [vmem:[%s112] sm:$0xff]
    %s114 = scalar_lea.vmem [#allocation3], 32
    %116 = vst [vmem:[%s114] sm:$0xff] %v113
    %s117 = scalar_lea.vmem %s1, 40
    %v118 = vld [vmem:[%s117] sm:$0xff]
    %s119 = scalar_lea.vmem [#allocation3], 40
    %121 = vst [vmem:[%s119] sm:$0xff] %v118
    %s122 = scalar_lea.vmem %s1, 48
    %v123 = vld [vmem:[%s122] sm:$0xff]
    %s124 = scalar_lea.vmem [#allocation3], 48
    %126 = vst [vmem:[%s124] sm:$0xff] %v123
    %s127 = scalar_lea.vmem %s1, 56
    %v128 = vld [vmem:[%s127] sm:$0xff]
    %s129 = scalar_lea.vmem [#allocation3], 56
    %131 = vst [vmem:[%s129] sm:$0xff] %v128
    %s132 = scalar_lea.vmem %s1, 64
    %v133 = vld [vmem:[%s132] sm:$0xff]
    %s134 = scalar_lea.vmem [#allocation3], 64
    %136 = vst [vmem:[%s134] sm:$0xff] %v133
    %s137 = scalar_lea.vmem %s1, 72
    %v138 = vld [vmem:[%s137] sm:$0xff]
    %s139 = scalar_lea.vmem [#allocation3], 72
    %141 = vst [vmem:[%s139] sm:$0xff] %v138
    %s142 = scalar_lea.vmem %s1, 80
    %v143 = vld [vmem:[%s142] sm:$0xff]
    %s144 = scalar_lea.vmem [#allocation3], 80
    %146 = vst [vmem:[%s144] sm:$0xff] %v143
    %s147 = scalar_lea.vmem %s1, 88
    %v148 = vld [vmem:[%s147] sm:$0xff]
    %s149 = scalar_lea.vmem [#allocation3], 88
    %151 = vst [vmem:[%s149] sm:$0xff] %v148
    %s152 = scalar_lea.vmem %s1, 96
    %v153 = vld [vmem:[%s152] sm:$0xff]
    %s154 = scalar_lea.vmem [#allocation3], 96
    %156 = vst [vmem:[%s154] sm:$0xff] %v153
    %s157 = scalar_lea.vmem %s1, 104
    %v158 = vld [vmem:[%s157] sm:$0xff]
    %s159 = scalar_lea.vmem [#allocation3], 104
    %161 = vst [vmem:[%s159] sm:$0xff] %v158
    %s162 = scalar_lea.vmem %s1, 112
    %v163 = vld [vmem:[%s162] sm:$0xff]
    %s164 = scalar_lea.vmem [#allocation3], 112
    %166 = vst [vmem:[%s164] sm:$0xff] %v163
    %s167 = scalar_lea.vmem %s1, 120
    %v168 = vld [vmem:[%s167] sm:$0xff]
    %s169 = scalar_lea.vmem [#allocation3], 120
    %171 = vst [vmem:[%s169] sm:$0xff] %v168
    %v172 = vld [vmem:[%s0] sm:$0xff]
    %v173 = vld [vmem:[%s0 + $0x8] sm:$0xff]
    %v174 = vld [vmem:[%s0 + $0x10] sm:$0xff]
    %v175 = vld [vmem:[%s0 + $0x18] sm:$0xff]
    %v176 = vld [vmem:[%s0 + $0x20] sm:$0xff]
    %v177 = vld [vmem:[%s0 + $0x28] sm:$0xff]
    %v178 = vld [vmem:[%s0 + $0x30] sm:$0xff]
    %v179 = vld [vmem:[%s0 + $0x38] sm:$0xff]
    %v180 = vld [vmem:[#allocation2] sm:$0xff]
    %v181 = vld [vmem:[#allocation2 + $0x8] sm:$0xff]
    %v182 = vld [vmem:[#allocation2 + $0x10] sm:$0xff]
    %v183 = vld [vmem:[#allocation2 + $0x18] sm:$0xff]
    %v184 = vld [vmem:[#allocation2 + $0x20] sm:$0xff]
    %v185 = vld [vmem:[#allocation2 + $0x28] sm:$0xff]
    %v186 = vld [vmem:[#allocation2 + $0x30] sm:$0xff]
    %v187 = vld [vmem:[#allocation2 + $0x38] sm:$0xff]
    %v188 = vld [vmem:[#allocation2 + $0x40] sm:$0xff]
    %v189 = vld [vmem:[#allocation2 + $0x48] sm:$0xff]
    %v190 = vld [vmem:[#allocation2 + $0x50] sm:$0xff]
    %v191 = vld [vmem:[#allocation2 + $0x58] sm:$0xff]
    %v192 = vld [vmem:[#allocation2 + $0x60] sm:$0xff]
    %v193 = vld [vmem:[#allocation2 + $0x68] sm:$0xff]
    %v194 = vld [vmem:[#allocation2 + $0x70] sm:$0xff]
    %v195 = vld [vmem:[#allocation2 + $0x78] sm:$0xff]
    %v196 = vmul.f32 %v180, %v172
    %v197 = vmul.f32 %v181, %v173
    %v198 = vmul.f32 %v182, %v174
    %v199 = vmul.f32 %v183, %v175
    %v200 = vmul.f32 %v184, %v176
    %v201 = vmul.f32 %v185, %v177
    %v202 = vmul.f32 %v186, %v178
    %v203 = vmul.f32 %v187, %v179
    %v204 = vmul.f32 %v188, %v172
    %v205 = vmul.f32 %v189, %v173
    %v206 = vmul.f32 %v190, %v174
    %v207 = vmul.f32 %v191, %v175
    %v208 = vmul.f32 %v192, %v176
    %v209 = vmul.f32 %v193, %v177
    %v210 = vmul.f32 %v194, %v178
    %v211 = vmul.f32 %v195, %v179
    %212 = vst [vmem:[%s3] sm:$0xff] %v196
    %213 = vst [vmem:[%s3 + $0x8] sm:$0xff] %v197
    %214 = vst [vmem:[%s3 + $0x10] sm:$0xff] %v198
    %215 = vst [vmem:[%s3 + $0x18] sm:$0xff] %v199
    %216 = vst [vmem:[%s3 + $0x20] sm:$0xff] %v200
    %217 = vst [vmem:[%s3 + $0x28] sm:$0xff] %v201
    %218 = vst [vmem:[%s3 + $0x30] sm:$0xff] %v202
    %219 = vst [vmem:[%s3 + $0x38] sm:$0xff] %v203
    %220 = vst [vmem:[%s3 + $0x40] sm:$0xff] %v204
    %221 = vst [vmem:[%s3 + $0x48] sm:$0xff] %v205
    %222 = vst [vmem:[%s3 + $0x50] sm:$0xff] %v206
    %223 = vst [vmem:[%s3 + $0x58] sm:$0xff] %v207
    %224 = vst [vmem:[%s3 + $0x60] sm:$0xff] %v208
    %225 = vst [vmem:[%s3 + $0x68] sm:$0xff] %v209
    %226 = vst [vmem:[%s3 + $0x70] sm:$0xff] %v210
    %227 = vst [vmem:[%s3 + $0x78] sm:$0xff] %v211
    %v228 = vld [vmem:[#allocation3] sm:$0xff]
    %v229 = vld [vmem:[#allocation3 + $0x8] sm:$0xff]
    %v230 = vld [vmem:[#allocation3 + $0x10] sm:$0xff]
    %v231 = vld [vmem:[#allocation3 + $0x18] sm:$0xff]
    %v232 = vld [vmem:[#allocation3 + $0x20] sm:$0xff]
    %v233 = vld [vmem:[#allocation3 + $0x28] sm:$0xff]
    %v234 = vld [vmem:[#allocation3 + $0x30] sm:$0xff]
    %v235 = vld [vmem:[#allocation3 + $0x38] sm:$0xff]
    %v236 = vld [vmem:[#allocation3 + $0x40] sm:$0xff]
    %v237 = vld [vmem:[#allocation3 + $0x48] sm:$0xff]
    %v238 = vld [vmem:[#allocation3 + $0x50] sm:$0xff]
    %v239 = vld [vmem:[#allocation3 + $0x58] sm:$0xff]
    %v240 = vld [vmem:[#allocation3 + $0x60] sm:$0xff]
    %v241 = vld [vmem:[#allocation3 + $0x68] sm:$0xff]
    %v242 = vld [vmem:[#allocation3 + $0x70] sm:$0xff]
    %v243 = vld [vmem:[#allocation3 + $0x78] sm:$0xff]
    %v244 = vmul.f32 %v228, %v172
    %v245 = vmul.f32 %v229, %v173
    %v246 = vmul.f32 %v230, %v174
    %v247 = vmul.f32 %v231, %v175
    %v248 = vmul.f32 %v232, %v176
    %v249 = vmul.f32 %v233, %v177
    %v250 = vmul.f32 %v234, %v178
    %v251 = vmul.f32 %v235, %v179
    %v252 = vmul.f32 %v236, %v172
    %v253 = vmul.f32 %v237, %v173
    %v254 = vmul.f32 %v238, %v174
    %v255 = vmul.f32 %v239, %v175
    %v256 = vmul.f32 %v240, %v176
    %v257 = vmul.f32 %v241, %v177
    %v258 = vmul.f32 %v242, %v178
    %v259 = vmul.f32 %v243, %v179
    %260 = vst [vmem:[%s4] sm:$0xff] %v244
    %261 = vst [vmem:[%s4 + $0x8] sm:$0xff] %v245
    %262 = vst [vmem:[%s4 + $0x10] sm:$0xff] %v246
    %263 = vst [vmem:[%s4 + $0x18] sm:$0xff] %v247
    %264 = vst [vmem:[%s4 + $0x20] sm:$0xff] %v248
    %265 = vst [vmem:[%s4 + $0x28] sm:$0xff] %v249
    %266 = vst [vmem:[%s4 + $0x30] sm:$0xff] %v250
    %267 = vst [vmem:[%s4 + $0x38] sm:$0xff] %v251
    %268 = vst [vmem:[%s4 + $0x40] sm:$0xff] %v252
    %269 = vst [vmem:[%s4 + $0x48] sm:$0xff] %v253
    %270 = vst [vmem:[%s4 + $0x50] sm:$0xff] %v254
    %271 = vst [vmem:[%s4 + $0x58] sm:$0xff] %v255
    %272 = vst [vmem:[%s4 + $0x60] sm:$0xff] %v256
    %273 = vst [vmem:[%s4 + $0x68] sm:$0xff] %v257
    %274 = vst [vmem:[%s4 + $0x70] sm:$0xff] %v258
    %275 = vst [vmem:[%s4 + $0x78] sm:$0xff] %v259
    // Predicated region
    $region14: #{_kspace_filter_forward.2} parent=1 // pred_check
      _
    $region15: #{_kspace_filter_forward.2} parent=1 // pred_check_branch
      %277 = sbr.rel (0) target = $region17
    $region16: #{_kspace_filter_forward.2} parent=1 // pred_region
      _
    $region17: #{_kspace_filter_forward.2} parent=1 // pred_fallthru
      _
    // Predicated region
    $region18: #{_kspace_filter_forward.2} parent=1 // pred_check
      _
    $region19: #{_kspace_filter_forward.2} parent=1 // pred_check_branch
      %279 = sbr.rel (0) target = $region21
    $region20: #{_kspace_filter_forward.2} parent=1 // pred_region
      _
    $region21: #{_kspace_filter_forward.2} parent=1 // pred_fallthru
      _
    // Predicated region
    $region22: #{_kspace_filter_forward.2} parent=1 // pred_check
      _
    $region23: #{_kspace_filter_forward.2} parent=1 // pred_check_branch
      %281 = sbr.rel (0) target = $region25
    $region24: #{_kspace_filter_forward.2} parent=1 // pred_region
      _
    $region25: #{_kspace_filter_forward.2} parent=1 // pred_fallthru
      _
    // Predicated region
    $region26: #{_kspace_filter_forward.2} parent=1 // pred_check
      _
    $region27: #{_kspace_filter_forward.2} parent=1 // pred_check_branch
      %283 = sbr.rel (0) target = $region29
    $region28: #{_kspace_filter_forward.2} parent=1 // pred_region
      _
    $region29: #{_kspace_filter_forward.2} parent=1 // pred_fallthru
      _

// kernel: reverse.1
$region0: #{reverse.1}
  #allocation0 [shape = 's32[1]{0}', space=sflag, size = 0x4, scoped, tag = 'scoped memory for reverse.1']
  %s0 = inlined_call_operand.vmem [shape: f32[2,16,16,7], index: 0, kind: input, shape index: {}]
  %s1 = inlined_call_operand.vmem [shape: f32[2,16,16,7], index: 1, kind: output, shape index: {}]
  %s2 = scalar_lea.vmem %s0, 96
  %v3 = vld [vmem:[%s2] sm:$0xff]
  %4 = vst [vmem:[%s1] sm:$0xff] %v3
  %s5 = scalar_lea.vmem %s0, 208
  %v6 = vld [vmem:[%s5] sm:$0xff]
  %s7 = scalar_lea.vmem %s1, 112
  %8 = vst [vmem:[%s7] sm:$0xff] %v6
  %s9 = scalar_lea.vmem %s0, 80
  %v10 = vld [vmem:[%s9] sm:$0xff]
  %s11 = scalar_lea.vmem %s1, 16
  %12 = vst [vmem:[%s11] sm:$0xff] %v10
  %s13 = scalar_lea.vmem %s0, 192
  %v14 = vld [vmem:[%s13] sm:$0xff]
  %s15 = scalar_lea.vmem %s1, 128
  %16 = vst [vmem:[%s15] sm:$0xff] %v14
  %s17 = scalar_lea.vmem %s0, 64
  %v18 = vld [vmem:[%s17] sm:$0xff]
  %s19 = scalar_lea.vmem %s1, 32
  %20 = vst [vmem:[%s19] sm:$0xff] %v18
  %s21 = scalar_lea.vmem %s0, 176
  %v22 = vld [vmem:[%s21] sm:$0xff]
  %s23 = scalar_lea.vmem %s1, 144
  %24 = vst [vmem:[%s23] sm:$0xff] %v22
  %s25 = scalar_lea.vmem %s0, 48
  %v26 = vld [vmem:[%s25] sm:$0xff]
  %s27 = scalar_lea.vmem %s1, 48
  %28 = vst [vmem:[%s27] sm:$0xff] %v26
  %s29 = scalar_lea.vmem %s0, 160
  %v30 = vld [vmem:[%s29] sm:$0xff]
  %s31 = scalar_lea.vmem %s1, 160
  %32 = vst [vmem:[%s31] sm:$0xff] %v30
  %s33 = scalar_lea.vmem %s0, 32
  %v34 = vld [vmem:[%s33] sm:$0xff]
  %s35 = scalar_lea.vmem %s1, 64
  %36 = vst [vmem:[%s35] sm:$0xff] %v34
  %s37 = scalar_lea.vmem %s0, 144
  %v38 = vld [vmem:[%s37] sm:$0xff]
  %s39 = scalar_lea.vmem %s1, 176
  %40 = vst [vmem:[%s39] sm:$0xff] %v38
  %s41 = scalar_lea.vmem %s0, 16
  %v42 = vld [vmem:[%s41] sm:$0xff]
  %s43 = scalar_lea.vmem %s1, 80
  %44 = vst [vmem:[%s43] sm:$0xff] %v42
  %s45 = scalar_lea.vmem %s0, 128
  %v46 = vld [vmem:[%s45] sm:$0xff]
  %s47 = scalar_lea.vmem %s1, 192
  %48 = vst [vmem:[%s47] sm:$0xff] %v46
  %v49 = vld [vmem:[%s0] sm:$0xff]
  %s50 = scalar_lea.vmem %s1, 96
  %51 = vst [vmem:[%s50] sm:$0xff] %v49
  %s52 = scalar_lea.vmem %s0, 112
  %v53 = vld [vmem:[%s52] sm:$0xff]
  %s54 = scalar_lea.vmem %s1, 208
  %55 = vst [vmem:[%s54] sm:$0xff] %v53
  %s56 = scalar_lea.vmem %s0, 104
  %v57 = vld [vmem:[%s56] sm:$0xff]
  %s58 = scalar_lea.vmem %s1, 8
  %59 = vst [vmem:[%s58] sm:$0xff] %v57
  %s60 = scalar_lea.vmem %s0, 216
  %v61 = vld [vmem:[%s60] sm:$0xff]
  %s62 = scalar_lea.vmem %s1, 120
  %63 = vst [vmem:[%s62] sm:$0xff] %v61
  %s64 = scalar_lea.vmem %s0, 88
  %v65 = vld [vmem:[%s64] sm:$0xff]
  %s66 = scalar_lea.vmem %s1, 24
  %67 = vst [vmem:[%s66] sm:$0xff] %v65
  %s68 = scalar_lea.vmem %s0, 200
  %v69 = vld [vmem:[%s68] sm:$0xff]
  %s70 = scalar_lea.vmem %s1, 136
  %71 = vst [vmem:[%s70] sm:$0xff] %v69
  %s72 = scalar_lea.vmem %s0, 72
  %v73 = vld [vmem:[%s72] sm:$0xff]
  %s74 = scalar_lea.vmem %s1, 40
  %75 = vst [vmem:[%s74] sm:$0xff] %v73
  %s76 = scalar_lea.vmem %s0, 184
  %v77 = vld [vmem:[%s76] sm:$0xff]
  %s78 = scalar_lea.vmem %s1, 152
  %79 = vst [vmem:[%s78] sm:$0xff] %v77
  %s80 = scalar_lea.vmem %s0, 56
  %v81 = vld [vmem:[%s80] sm:$0xff]
  %s82 = scalar_lea.vmem %s1, 56
  %83 = vst [vmem:[%s82] sm:$0xff] %v81
  %s84 = scalar_lea.vmem %s0, 168
  %v85 = vld [vmem:[%s84] sm:$0xff]
  %s86 = scalar_lea.vmem %s1, 168
  %87 = vst [vmem:[%s86] sm:$0xff] %v85
  %s88 = scalar_lea.vmem %s0, 40
  %v89 = vld [vmem:[%s88] sm:$0xff]
  %s90 = scalar_lea.vmem %s1, 72
  %91 = vst [vmem:[%s90] sm:$0xff] %v89
  %s92 = scalar_lea.vmem %s0, 152
  %v93 = vld [vmem:[%s92] sm:$0xff]
  %s94 = scalar_lea.vmem %s1, 184
  %95 = vst [vmem:[%s94] sm:$0xff] %v93
  %s96 = scalar_lea.vmem %s0, 24
  %v97 = vld [vmem:[%s96] sm:$0xff]
  %s98 = scalar_lea.vmem %s1, 88
  %99 = vst [vmem:[%s98] sm:$0xff] %v97
  %s100 = scalar_lea.vmem %s0, 136
  %v101 = vld [vmem:[%s100] sm:$0xff]
  %s102 = scalar_lea.vmem %s1, 200
  %103 = vst [vmem:[%s102] sm:$0xff] %v101
  %s104 = scalar_lea.vmem %s0, 8
  %v105 = vld [vmem:[%s104] sm:$0xff]
  %s106 = scalar_lea.vmem %s1, 104
  %107 = vst [vmem:[%s106] sm:$0xff] %v105
  %s108 = scalar_lea.vmem %s0, 120
  %v109 = vld [vmem:[%s108] sm:$0xff]
  %s110 = scalar_lea.vmem %s1, 216
  %111 = vst [vmem:[%s110] sm:$0xff] %v109

</llo_original>
